<compile_context>
chip_gen: v7x
topology: tpu7x:2x2x1
jax: 0.10.0
libtpu: 0.0.40
codegen_flags: <defaults>
</compile_context>

<pallas_src>
import jax
import jax.numpy as jnp
from jax.experimental import pallas as pl
from jax.experimental.pallas import tpu as pltpu


def _cdiv(a, b):
    return -(-a // b)


def _round_up(x, m):
    return _cdiv(x, m) * m


def _p6_conv_kernel(x0_ref, x1_ref, x2_ref, wm_ref, ws_ref, b_ref, om_ref, os_ref):
    """One (TM, Coutp) block of the stride-2 3x3 conv.

    x{kh}_ref : (TM, 2*Cin) bf16. Rows are extended output positions (ho, w2); the
                columns hold the Cin channels of input columns {2*w2, 2*w2+1} of
                padded input row 2*ho + kh.
    wm_ref    : (3, 2*Cin, Coutp) bf16 -- [W[kh,0]; W[kh,1]] stacked along Cin.
    ws_ref    : (3, Cin, Coutp)  bf16 -- W[kh,2].
    b_ref     : (1, Coutp) f32 bias.
    om_ref    : (TM, Coutp) f32 -- bias + kw={0,1} taps of row m.
    os_ref    : (TM, Coutp) f32 -- kw=2 taps that belong to row m-1 (wrapper shifts).
    """
    cin = ws_ref.shape[1]
    acc_m = jnp.zeros(om_ref.shape, jnp.float32)
    acc_s = jnp.zeros(os_ref.shape, jnp.float32)
    for kh, x_ref in enumerate((x0_ref, x1_ref, x2_ref)):
        a = x_ref[...]                                              # (TM, 2*Cin) bf16
        acc_m = acc_m + jnp.dot(a, wm_ref[kh],
                                preferred_element_type=jnp.float32)
        acc_s = acc_s + jnp.dot(a[:, :cin], ws_ref[kh],
                                preferred_element_type=jnp.float32)
    om_ref[...] = acc_m + b_ref[...]
    os_ref[...] = acc_s


def last_level_p6_forward(x_nchw, weight_oihw, bias):
    """Equivalent of LastLevelP6.forward: returns [p6] (NCHW, same dtype as x)."""
    N, Cin, H, W = x_nchw.shape
    Cout = weight_oihw.shape[0]
    # torch Conv2d(k=3, s=2, p=1): Hout = floor((H + 2 - 3)/2) + 1 = ceil(H/2)
    Hout = (H + 1) // 2
    Wout = (W + 1) // 2
    Wp1 = Wout + 1                    # extended output columns per row (last is scratch)
    Wp2 = 2 * Wp1                     # padded input width, viewed as (Wp1, 2)

    # ---- tile selection: TR output rows per block (multiple of 8 -> sublane-aligned TM),
    #      ~256 matmul rows per block, and >=2 grid steps so both v7x TCs get work. ----
    TR = max(8, _round_up(max(1, 256 // Wp1), 8))
    TR = min(TR, _round_up(Hout, 8))
    if N * _cdiv(Hout, TR) < 2 and TR > 8:
        TR = max(8, _round_up(_cdiv(Hout, 2), 8))
    Hout_p = _round_up(Hout, TR)
    TM = TR * Wp1
    Coutp = _round_up(Cout, 128)      # lane-dense output stores
    M_ext = N * Hout_p * Wp1
    num_blocks = M_ext // TM

    # ---- activations: bf16 first (half the bytes through transpose/pad), NHWC, pad ----
    xb = x_nchw.astype(jnp.bfloat16)
    x_nhwc = jnp.transpose(xb, (0, 2, 3, 1))                              # (N,H,W,Cin)
    x_pad = jnp.pad(x_nhwc, ((0, 0), (1, 1), (1, Wp2 - (W + 1)), (0, 0)))  # (N,H+2,Wp2,Cin)

    # Three kh row-slices (stride-2 in H); row ho of slice kh is padded input row 2*ho+kh.
    x_k = []
    for kh in range(3):
        xk = x_pad[:, kh:kh + 2 * Hout:2, :, :]                           # (N,Hout,Wp2,Cin)
        xk = jnp.pad(xk, ((0, 0), (0, Hout_p - Hout), (0, 0), (0, 0)))
        # free reshape: (Wp2, Cin) == (Wp1, 2*Cin); flatten (n, ho, w2) -> M_ext rows
        x_k.append(xk.reshape(M_ext, 2 * Cin))

    # ---- weights: (Cout,Cin,3,3) -> per-kh (2*Cin,Cout) main and (Cin,Cout) shifted ----
    wt = jnp.transpose(weight_oihw, (2, 3, 1, 0))                         # (3,3,Cin,Cout)
    w_main = wt[:, 0:2].reshape(3, 2 * Cin, Cout)                         # [W[kh,0]; W[kh,1]]
    w_shift = wt[:, 2]                                                    # W[kh,2]
    w_main = jnp.pad(w_main, ((0, 0), (0, 0), (0, Coutp - Cout))).astype(jnp.bfloat16)
    w_shift = jnp.pad(w_shift, ((0, 0), (0, 0), (0, Coutp - Cout))).astype(jnp.bfloat16)
    b = jnp.pad(bias.astype(jnp.float32), (0, Coutp - Cout)).reshape(1, Coutp)

    # ---- VMEM budget: double-buffered A blocks + weights + output blocks ----
    a_bytes = 3 * 2 * TM * 2 * Cin * 2
    w_bytes = 2 * int(w_main.size + w_shift.size) * 2
    o_bytes = 2 * 2 * TM * Coutp * 4
    vmem_limit = max(32 * 1024 * 1024,
                     min(int(1.3 * (a_bytes + w_bytes + o_bytes)) + (2 << 20),
                         64 * 1024 * 1024))

    cost = pl.CostEstimate(
        flops=2 * M_ext * 9 * Cin * Coutp,
        transcendentals=0,
        bytes_accessed=(3 * M_ext * 2 * Cin * 2
                        + int(w_main.size + w_shift.size) * 2
                        + 2 * M_ext * Coutp * 4))

    o_main, o_shift = pl.pallas_call(
        _p6_conv_kernel,
        out_shape=(jax.ShapeDtypeStruct((M_ext, Coutp), jnp.float32),
                   jax.ShapeDtypeStruct((M_ext, Coutp), jnp.float32)),
        grid=(num_blocks,),
        in_specs=[
            pl.BlockSpec((TM, 2 * Cin), lambda i: (i, 0)),
            pl.BlockSpec((TM, 2 * Cin), lambda i: (i, 0)),
            pl.BlockSpec((TM, 2 * Cin), lambda i: (i, 0)),
            pl.BlockSpec((3, 2 * Cin, Coutp), lambda i: (0, 0, 0)),   # grid-invariant: DMA'd once
            pl.BlockSpec((3, Cin, Coutp), lambda i: (0, 0, 0)),       # grid-invariant: DMA'd once
            pl.BlockSpec((1, Coutp), lambda i: (0, 0)),               # grid-invariant: DMA'd once
        ],
        out_specs=(pl.BlockSpec((TM, Coutp), lambda i: (i, 0)),
                   pl.BlockSpec((TM, Coutp), lambda i: (i, 0))),
        compiler_params=pltpu.CompilerParams(
            dimension_semantics=("parallel",),
            vmem_limit_bytes=vmem_limit),
        cost_estimate=cost,
    )(x_k[0], x_k[1], x_k[2], w_main, w_shift, b)

    # kw=2 taps of extended row m were produced at row m+1: shift by one row and add.
    # The wrapped-around row and every (w2 == Wout) / padded-ho row are scratch rows,
    # sliced away below, so the wraparound never touches valid outputs.
    out_ext = o_main + jnp.roll(o_shift, -1, axis=0)
    out = out_ext.reshape(N, Hout_p, Wp1, Coutp)[:, :Hout, :Wout, :Cout]
    p6 = jnp.transpose(out, (0, 3, 1, 2)).astype(x_nchw.dtype)
    return [p6]


if __name__ == "__main__":
    key = jax.random.PRNGKey(0)
    kx, kw, kb, kx2 = jax.random.split(key, 4)

    N, Cin, Cout = 2, 4, 8
    # c2_xavier_fill == kaiming_uniform_(a=1): U(-sqrt(3/fan_in), sqrt(3/fan_in))
    fan_in = Cin * 3 * 3
    bound = (3.0 / fan_in) ** 0.5
    weight = jax.random.uniform(kw, (Cout, Cin, 3, 3), jnp.float32, -bound, bound)
    bias = 0.1 * jax.random.normal(kb, (Cout,), jnp.float32)   # nonzero -> exercises bias path

    def ref_conv(x):
        # reference with the same bf16-cast operands / f32 accumulation as the kernel
        y = jax.lax.conv_general_dilated(
            x.astype(jnp.bfloat16), weight.astype(jnp.bfloat16),
            window_strides=(2, 2), padding=((1, 1), (1, 1)),
            dimension_numbers=("NCHW", "OIHW", "NCHW"),
            preferred_element_type=jnp.float32)
        return y + bias[None, :, None, None]

    # even and odd spatial sizes (torch gives ceil(H/2) outputs for odd dims)
    for (H, W), kk in [((16, 16), kx), ((15, 15), kx2)]:
        x = jax.random.normal(kk, (N, Cin, H, W), dtype=jnp.float32)
        p6 = jax.block_until_ready(last_level_p6_forward(x, weight, bias)[0])
        ref = ref_conv(x)
        assert p6.shape == ref.shape == (N, Cout, (H + 1) // 2, (W + 1) // 2)
        err = float(jnp.max(jnp.abs(p6 - ref)))
        assert err < 2e-2, err

    print("KERNEL_OK")
</pallas_src>

<mosaic_0001>
module attributes {stable_mosaic.version = 11 : i64} {
  func.func @_p6_conv_kernel(%arg0: i32, %arg1: memref<72x8xbf16, #tpu.memory_space<vmem>>, %arg2: memref<72x8xbf16, #tpu.memory_space<vmem>>, %arg3: memref<72x8xbf16, #tpu.memory_space<vmem>>, %arg4: memref<3x8x128xbf16, #tpu.memory_space<vmem>>, %arg5: memref<3x4x128xbf16, #tpu.memory_space<vmem>>, %arg6: memref<1x128xf32, #tpu.memory_space<vmem>>, %arg7: memref<72x128xf32, #tpu.memory_space<vmem>>, %arg8: memref<72x128xf32, #tpu.memory_space<vmem>>) attributes {dimension_semantics = [#tpu.dimension_semantics<parallel>], iteration_bounds = array<i64: 2>, scalar_prefetch = 0 : i64, scratch_operands = 0 : i64, tpu.core_type = #tpu.core_type<tc>, window_params = [{transform_indices = @transform_0, window_bounds = array<i64: 72, 8>}, {transform_indices = @transform_1, window_bounds = array<i64: 72, 8>}, {transform_indices = @transform_2, window_bounds = array<i64: 72, 8>}, {pipeline_mode = #tpu.pipeline_mode<synchronous>, transform_indices = @transform_3, window_bounds = array<i64: 3, 8, 128>}, {pipeline_mode = #tpu.pipeline_mode<synchronous>, transform_indices = @transform_4, window_bounds = array<i64: 3, 4, 128>}, {pipeline_mode = #tpu.pipeline_mode<synchronous>, transform_indices = @transform_5, window_bounds = array<i64: 1, 128>}, {transform_indices = @transform_6, window_bounds = array<i64: 72, 128>}, {transform_indices = @transform_7, window_bounds = array<i64: 72, 128>}]} {
    %cst = arith.constant 0.000000e+00 : f32
    %0 = vector.broadcast %cst : f32 to vector<72x128xf32>
    %cst_0 = arith.constant 0.000000e+00 : f32
    %1 = vector.broadcast %cst_0 : f32 to vector<72x128xf32>
    %c0 = arith.constant 0 : index
    %c0_1 = arith.constant 0 : index
    %2 = vector.load %arg1[%c0, %c0_1] : memref<72x8xbf16, #tpu.memory_space<vmem>>, vector<72x8xbf16>
    %c0_2 = arith.constant 0 : index
    %c0_3 = arith.constant 0 : index
    %c0_4 = arith.constant 0 : index
    %3 = vector.load %arg4[%c0_2, %c0_3, %c0_4] : memref<3x8x128xbf16, #tpu.memory_space<vmem>>, vector<1x8x128xbf16>
    %4 = vector.shape_cast %3 : vector<1x8x128xbf16> to vector<8x128xbf16>
    %cst_5 = arith.constant dense<0.000000e+00> : vector<72x128xf32>
    %5 = tpu.matmul %2, %4, %cst_5 {dimension_numbers = #tpu.dot_dimension_numbers<[1], [0], [0], [1], [0, 0, 1, 1], [], []>} : vector<72x8xbf16>, vector<8x128xbf16>, vector<72x128xf32> -> vector<72x128xf32>
    %6 = arith.addf %0, %5 : vector<72x128xf32>
    %7 = vector.extract_strided_slice %2 {offsets = [0, 0], sizes = [72, 4], strides = [1, 1]} : vector<72x8xbf16> to vector<72x4xbf16>
    %c0_6 = arith.constant 0 : index
    %c0_7 = arith.constant 0 : index
    %c0_8 = arith.constant 0 : index
    %8 = vector.load %arg5[%c0_6, %c0_7, %c0_8] : memref<3x4x128xbf16, #tpu.memory_space<vmem>>, vector<1x4x128xbf16>
    %9 = vector.shape_cast %8 : vector<1x4x128xbf16> to vector<4x128xbf16>
    %cst_9 = arith.constant dense<0.000000e+00> : vector<72x128xf32>
    %10 = tpu.matmul %7, %9, %cst_9 {dimension_numbers = #tpu.dot_dimension_numbers<[1], [0], [0], [1], [0, 0, 1, 1], [], []>} : vector<72x4xbf16>, vector<4x128xbf16>, vector<72x128xf32> -> vector<72x128xf32>
    %11 = arith.addf %1, %10 : vector<72x128xf32>
    %c0_10 = arith.constant 0 : index
    %c0_11 = arith.constant 0 : index
    %12 = vector.load %arg2[%c0_10, %c0_11] : memref<72x8xbf16, #tpu.memory_space<vmem>>, vector<72x8xbf16>
    %c1 = arith.constant 1 : index
    %c0_12 = arith.constant 0 : index
    %c0_13 = arith.constant 0 : index
    %13 = vector.load %arg4[%c1, %c0_12, %c0_13] : memref<3x8x128xbf16, #tpu.memory_space<vmem>>, vector<1x8x128xbf16>
    %14 = vector.shape_cast %13 : vector<1x8x128xbf16> to vector<8x128xbf16>
    %cst_14 = arith.constant dense<0.000000e+00> : vector<72x128xf32>
    %15 = tpu.matmul %12, %14, %cst_14 {dimension_numbers = #tpu.dot_dimension_numbers<[1], [0], [0], [1], [0, 0, 1, 1], [], []>} : vector<72x8xbf16>, vector<8x128xbf16>, vector<72x128xf32> -> vector<72x128xf32>
    %16 = arith.addf %6, %15 : vector<72x128xf32>
    %17 = vector.extract_strided_slice %12 {offsets = [0, 0], sizes = [72, 4], strides = [1, 1]} : vector<72x8xbf16> to vector<72x4xbf16>
    %c1_15 = arith.constant 1 : index
    %c0_16 = arith.constant 0 : index
    %c0_17 = arith.constant 0 : index
    %18 = vector.load %arg5[%c1_15, %c0_16, %c0_17] : memref<3x4x128xbf16, #tpu.memory_space<vmem>>, vector<1x4x128xbf16>
    %19 = vector.shape_cast %18 : vector<1x4x128xbf16> to vector<4x128xbf16>
    %cst_18 = arith.constant dense<0.000000e+00> : vector<72x128xf32>
    %20 = tpu.matmul %17, %19, %cst_18 {dimension_numbers = #tpu.dot_dimension_numbers<[1], [0], [0], [1], [0, 0, 1, 1], [], []>} : vector<72x4xbf16>, vector<4x128xbf16>, vector<72x128xf32> -> vector<72x128xf32>
    %21 = arith.addf %11, %20 : vector<72x128xf32>
    %c0_19 = arith.constant 0 : index
    %c0_20 = arith.constant 0 : index
    %22 = vector.load %arg3[%c0_19, %c0_20] : memref<72x8xbf16, #tpu.memory_space<vmem>>, vector<72x8xbf16>
    %c2 = arith.constant 2 : index
    %c0_21 = arith.constant 0 : index
    %c0_22 = arith.constant 0 : index
    %23 = vector.load %arg4[%c2, %c0_21, %c0_22] : memref<3x8x128xbf16, #tpu.memory_space<vmem>>, vector<1x8x128xbf16>
    %24 = vector.shape_cast %23 : vector<1x8x128xbf16> to vector<8x128xbf16>
    %cst_23 = arith.constant dense<0.000000e+00> : vector<72x128xf32>
    %25 = tpu.matmul %22, %24, %cst_23 {dimension_numbers = #tpu.dot_dimension_numbers<[1], [0], [0], [1], [0, 0, 1, 1], [], []>} : vector<72x8xbf16>, vector<8x128xbf16>, vector<72x128xf32> -> vector<72x128xf32>
    %26 = arith.addf %16, %25 : vector<72x128xf32>
    %27 = vector.extract_strided_slice %22 {offsets = [0, 0], sizes = [72, 4], strides = [1, 1]} : vector<72x8xbf16> to vector<72x4xbf16>
    %c2_24 = arith.constant 2 : index
    %c0_25 = arith.constant 0 : index
    %c0_26 = arith.constant 0 : index
    %28 = vector.load %arg5[%c2_24, %c0_25, %c0_26] : memref<3x4x128xbf16, #tpu.memory_space<vmem>>, vector<1x4x128xbf16>
    %29 = vector.shape_cast %28 : vector<1x4x128xbf16> to vector<4x128xbf16>
    %cst_27 = arith.constant dense<0.000000e+00> : vector<72x128xf32>
    %30 = tpu.matmul %27, %29, %cst_27 {dimension_numbers = #tpu.dot_dimension_numbers<[1], [0], [0], [1], [0, 0, 1, 1], [], []>} : vector<72x4xbf16>, vector<4x128xbf16>, vector<72x128xf32> -> vector<72x128xf32>
    %31 = arith.addf %21, %30 : vector<72x128xf32>
    %c0_28 = arith.constant 0 : index
    %c0_29 = arith.constant 0 : index
    %32 = vector.load %arg6[%c0_28, %c0_29] : memref<1x128xf32, #tpu.memory_space<vmem>>, vector<1x128xf32>
    %33 = vector.broadcast %32 : vector<1x128xf32> to vector<72x128xf32>
    %34 = arith.addf %26, %33 : vector<72x128xf32>
    %c0_30 = arith.constant 0 : index
    %c0_31 = arith.constant 0 : index
    %35 = vector.load %arg7[%c0_30, %c0_31] : memref<72x128xf32, #tpu.memory_space<vmem>>, vector<72x128xf32>
    tpu.vector_store %arg7[%c0_30, %c0_31], %34 {strides = array<i32>} : memref<72x128xf32, #tpu.memory_space<vmem>>, vector<72x128xf32>,
    %c0_32 = arith.constant 0 : index
    %c0_33 = arith.constant 0 : index
    %36 = vector.load %arg8[%c0_32, %c0_33] : memref<72x128xf32, #tpu.memory_space<vmem>>, vector<72x128xf32>
    tpu.vector_store %arg8[%c0_32, %c0_33], %31 {strides = array<i32>} : memref<72x128xf32, #tpu.memory_space<vmem>>, vector<72x128xf32>,
    return
  }
  func.func @transform_0(%arg0: i32) -> (i32, i32) {
    %c0_i32 = arith.constant 0 : i32
    %c0_i32_0 = arith.constant 0 : i32
    return %arg0, %c0_i32 : i32, i32
  }
  func.func @transform_1(%arg0: i32) -> (i32, i32) {
    %c0_i32 = arith.constant 0 : i32
    %c0_i32_0 = arith.constant 0 : i32
    return %arg0, %c0_i32 : i32, i32
  }
  func.func @transform_2(%arg0: i32) -> (i32, i32) {
    %c0_i32 = arith.constant 0 : i32
    %c0_i32_0 = arith.constant 0 : i32
    return %arg0, %c0_i32 : i32, i32
  }
  func.func @transform_3(%arg0: i32) -> (i32, i32, i32) {
    %c0_i32 = arith.constant 0 : i32
    %c0_i32_0 = arith.constant 0 : i32
    %c0_i32_1 = arith.constant 0 : i32
    %c0_i32_2 = arith.constant 0 : i32
    return %c0_i32, %c0_i32_0, %c0_i32_1 : i32, i32, i32
  }
  func.func @transform_4(%arg0: i32) -> (i32, i32, i32) {
    %c0_i32 = arith.constant 0 : i32
    %c0_i32_0 = arith.constant 0 : i32
    %c0_i32_1 = arith.constant 0 : i32
    %c0_i32_2 = arith.constant 0 : i32
    return %c0_i32, %c0_i32_0, %c0_i32_1 : i32, i32, i32
  }
  func.func @transform_5(%arg0: i32) -> (i32, i32) {
    %c0_i32 = arith.constant 0 : i32
    %c0_i32_0 = arith.constant 0 : i32
    %c0_i32_1 = arith.constant 0 : i32
    return %c0_i32, %c0_i32_0 : i32, i32
  }
  func.func @transform_6(%arg0: i32) -> (i32, i32) {
    %c0_i32 = arith.constant 0 : i32
    %c0_i32_0 = arith.constant 0 : i32
    return %arg0, %c0_i32 : i32, i32
  }
  func.func @transform_7(%arg0: i32) -> (i32, i32) {
    %c0_i32 = arith.constant 0 : i32
    %c0_i32_0 = arith.constant 0 : i32
    return %arg0, %c0_i32 : i32, i32
  }
}

</mosaic_0001>

<llo_original>
// kernel: tpu_custom_call.1
$region0: #{tpu_custom_call.1}
  #allocation0 [shape = 'u32[]', space=smem, size = 0x4, offset = 0x4, fixed_abs, tag = 'smem constant byte address 0x4 - core index']
  #allocation1 [shape = 'u32[144,128]{1,0:T(1,128)}', space=vmem, size = 0x12000, scoped, tag = 'internal scratch']
  %s0 = inlined_call_operand.vmem [shape: bf16[144,8], index: 0, kind: input, shape index: {}]
  %s1 = inlined_call_operand.vmem [shape: bf16[144,8], index: 1, kind: input, shape index: {}]
  %s2 = inlined_call_operand.vmem [shape: bf16[144,8], index: 2, kind: input, shape index: {}]
  %s3 = inlined_call_operand.vmem [shape: bf16[3,8,128], index: 3, kind: input, shape index: {}]
  %s4 = inlined_call_operand.vmem [shape: bf16[3,4,128], index: 4, kind: input, shape index: {}]
  %s5 = inlined_call_operand.vmem [shape: f32[1,128], index: 5, kind: input, shape index: {}]
  %s6 = inlined_call_operand.hbm [shape: f32[144,128], index: 6, kind: output, shape index: {0}]
  %s7 = inlined_call_operand.hbm [shape: f32[144,128], index: 7, kind: output, shape index: {1}]
  %8 = xla_tuple %s6, %s7
  %s9 = sld [smem:[#allocation0]]
  $region65: #{tpu_custom_call.1} parent=0
    _
  %s11 = ssub.s32 1, %s9
  %s12 = scalar_select 0, %s11, %s9
  $region1: #{tpu_custom_call.1} parent=0
    #allocation2 [shape = 'u8[73728]{0}', space=vmem, size = 0x12000, scoped, tag = 'output window, operand 0']
    #allocation3 [shape = 's32[2]{0}', space=sflag, size = 0x8, scoped, tag = 'scoped memory for tpu_custom_call.1']
    #allocation4 [shape = 'u8[73728]{0}', space=vmem, size = 0x12000, scoped, tag = 'output window, operand 1']
    #allocation5 [shape = 's32[2]{0}', space=sflag, size = 0x8, scoped, tag = 'scoped memory for tpu_custom_call.1']
    %13 = vsyncpa [#allocation3], 0
    %s14 = scalar_lea.sflag [#allocation3], 1
    %15 = vsyncpa %s14, 0
    %16 = vsyncpa [#allocation5], 0
    %s17 = scalar_lea.sflag [#allocation5], 1
    %18 = vsyncpa %s17, 0
    loop: start=0, step=1, limit=4
    $region2: #{tpu_custom_call.1} parent=1 // loop_pre_header
      _
    $region3: #{tpu_custom_call.1} parent=1 // loop_header
      %s20 = sphi 0, %s24
      %p21 = scmp.ge.s32.totalorder %s20, 4
      %s30 = sphi 0, %s32
      %s33 = sphi 0, %s30
      %s34 = sphi 0, %s33
      %s50 = sphi 0, %s34
      %s56 = sphi 0, %s58
      %s59 = sphi 0, %s56
      %s60 = sphi 0, %s59
      %s76 = sphi 0, %s60
      %s82 = sphi 0, %s84
      %s85 = sphi 0, %s82
      %s86 = sphi 0, %s85
      %s102 = sphi 0, %s86
      %s106 = sphi 0, %s106
      %s108 = sphi 0, %s106
      %s109 = sphi 0, %s108
      %s123 = sphi 0, %s109
      %s127 = sphi 0, %s127
      %s129 = sphi 0, %s127
      %s130 = sphi 0, %s129
      %s144 = sphi 0, %s130
      %s148 = sphi 0, %s148
      %s150 = sphi 0, %s148
      %s151 = sphi 0, %s150
      %s165 = sphi 0, %s151
      %s171 = sphi 0, %s173
      %s174 = sphi 0, %s171
      %s175 = sphi 0, %s174
      %s191 = sphi 0, %s175
      %s197 = sphi 0, %s199
      %s200 = sphi 0, %s197
      %s201 = sphi 0, %s200
      %s217 = sphi 0, %s201
    $region4: #{tpu_custom_call.1} parent=1 // loop_header_branch
      %23 = sbr.rel (%p21) target = $region8
    $region5: #{tpu_custom_call.1} parent=1 // loop_body
      %s25 = ssub.s32 %s20, 1
      %s26 = ssub.s32 %s20, 2
      %s27 = sadd.s32 %s20, 1
      %s28 = ssub.s32 %s20, %s27
      %p29 = scmp.eq.s32.totalorder %s28, 0
      %s31 = sadd.s32 %s30, 1
      %s32 = scalar_select %p29, %s30, %s31
      %p35 = pneg %p29
      %p36 = scmp.eq.s32.totalorder %s20, 1
      %p37 = por %p35, %p36
      %p38 = scmp.ne.s32.totalorder %s30, %s33
      %p39 = scmp.eq.s32.totalorder %s20, 0
      %p40 = por %p38, %p39
      %p41 = scmp.ne.s32.totalorder %s30, %s33
      %p42 = scmp.eq.s32.totalorder %s25, 1
      %p43 = por %p41, %p42
      %p44 = scmp.ne.s32.totalorder %s33, %s34
      %p45 = scmp.eq.s32.totalorder %s25, 0
      %p46 = por %p44, %p45
      %p47 = scmp.ne.s32.totalorder %s33, %s34
      %p48 = scmp.eq.s32.totalorder %s26, 1
      %p49 = por %p47, %p48
      %p51 = scmp.ne.s32.totalorder %s34, %s50
      %p52 = scmp.eq.s32.totalorder %s26, 0
      %p53 = por %p51, %p52
      %s54 = ssub.s32 %s20, %s27
      %p55 = scmp.eq.s32.totalorder %s54, 0
      %s57 = sadd.s32 %s56, 1
      %s58 = scalar_select %p55, %s56, %s57
      %p61 = pneg %p55
      %p62 = scmp.eq.s32.totalorder %s20, 1
      %p63 = por %p61, %p62
      %p64 = scmp.ne.s32.totalorder %s56, %s59
      %p65 = scmp.eq.s32.totalorder %s20, 0
      %p66 = por %p64, %p65
      %p67 = scmp.ne.s32.totalorder %s56, %s59
      %p68 = scmp.eq.s32.totalorder %s25, 1
      %p69 = por %p67, %p68
      %p70 = scmp.ne.s32.totalorder %s59, %s60
      %p71 = scmp.eq.s32.totalorder %s25, 0
      %p72 = por %p70, %p71
      %p73 = scmp.ne.s32.totalorder %s59, %s60
      %p74 = scmp.eq.s32.totalorder %s26, 1
      %p75 = por %p73, %p74
      %p77 = scmp.ne.s32.totalorder %s60, %s76
      %p78 = scmp.eq.s32.totalorder %s26, 0
      %p79 = por %p77, %p78
      %s80 = ssub.s32 %s20, %s27
      %p81 = scmp.eq.s32.totalorder %s80, 0
      %s83 = sadd.s32 %s82, 1
      %s84 = scalar_select %p81, %s82, %s83
      %p87 = pneg %p81
      %p88 = scmp.eq.s32.totalorder %s20, 1
      %p89 = por %p87, %p88
      %p90 = scmp.ne.s32.totalorder %s82, %s85
      %p91 = scmp.eq.s32.totalorder %s20, 0
      %p92 = por %p90, %p91
      %p93 = scmp.ne.s32.totalorder %s82, %s85
      %p94 = scmp.eq.s32.totalorder %s25, 1
      %p95 = por %p93, %p94
      %p96 = scmp.ne.s32.totalorder %s85, %s86
      %p97 = scmp.eq.s32.totalorder %s25, 0
      %p98 = por %p96, %p97
      %p99 = scmp.ne.s32.totalorder %s85, %s86
      %p100 = scmp.eq.s32.totalorder %s26, 1
      %p101 = por %p99, %p100
      %p103 = scmp.ne.s32.totalorder %s86, %s102
      %p104 = scmp.eq.s32.totalorder %s26, 0
      %p105 = por %p103, %p104
      %s107 = sadd.s32 %s106, 1
      %p110 = scmp.eq.s32.totalorder %s20, 1
      %p111 = scmp.ne.s32.totalorder %s106, %s108
      %p112 = scmp.eq.s32.totalorder %s20, 0
      %p113 = por %p111, %p112
      %p114 = scmp.ne.s32.totalorder %s106, %s108
      %p115 = scmp.eq.s32.totalorder %s25, 1
      %p116 = por %p114, %p115
      %p117 = scmp.ne.s32.totalorder %s108, %s109
      %p118 = scmp.eq.s32.totalorder %s25, 0
      %p119 = por %p117, %p118
      %p120 = scmp.ne.s32.totalorder %s108, %s109
      %p121 = scmp.eq.s32.totalorder %s26, 1
      %p122 = por %p120, %p121
      %p124 = scmp.ne.s32.totalorder %s109, %s123
      %p125 = scmp.eq.s32.totalorder %s26, 0
      %p126 = por %p124, %p125
      %s128 = sadd.s32 %s127, 1
      %p131 = scmp.eq.s32.totalorder %s20, 1
      %p132 = scmp.ne.s32.totalorder %s127, %s129
      %p133 = scmp.eq.s32.totalorder %s20, 0
      %p134 = por %p132, %p133
      %p135 = scmp.ne.s32.totalorder %s127, %s129
      %p136 = scmp.eq.s32.totalorder %s25, 1
      %p137 = por %p135, %p136
      %p138 = scmp.ne.s32.totalorder %s129, %s130
      %p139 = scmp.eq.s32.totalorder %s25, 0
      %p140 = por %p138, %p139
      %p141 = scmp.ne.s32.totalorder %s129, %s130
      %p142 = scmp.eq.s32.totalorder %s26, 1
      %p143 = por %p141, %p142
      %p145 = scmp.ne.s32.totalorder %s130, %s144
      %p146 = scmp.eq.s32.totalorder %s26, 0
      %p147 = por %p145, %p146
      %s149 = sadd.s32 %s148, 1
      %p152 = scmp.eq.s32.totalorder %s20, 1
      %p153 = scmp.ne.s32.totalorder %s148, %s150
      %p154 = scmp.eq.s32.totalorder %s20, 0
      %p155 = por %p153, %p154
      %p156 = scmp.ne.s32.totalorder %s148, %s150
      %p157 = scmp.eq.s32.totalorder %s25, 1
      %p158 = por %p156, %p157
      %p159 = scmp.ne.s32.totalorder %s150, %s151
      %p160 = scmp.eq.s32.totalorder %s25, 0
      %p161 = por %p159, %p160
      %p162 = scmp.ne.s32.totalorder %s150, %s151
      %p163 = scmp.eq.s32.totalorder %s26, 1
      %p164 = por %p162, %p163
      %p166 = scmp.ne.s32.totalorder %s151, %s165
      %p167 = scmp.eq.s32.totalorder %s26, 0
      %p168 = por %p166, %p167
      %s169 = ssub.s32 %s20, %s27
      %p170 = scmp.eq.s32.totalorder %s169, 0
      %s172 = sadd.s32 %s171, 1
      %s173 = scalar_select %p170, %s171, %s172
      %p176 = pneg %p170
      %p177 = scmp.eq.s32.totalorder %s20, 1
      %p178 = por %p176, %p177
      %p179 = scmp.ne.s32.totalorder %s171, %s174
      %p180 = scmp.eq.s32.totalorder %s20, 0
      %p181 = por %p179, %p180
      %p182 = scmp.ne.s32.totalorder %s171, %s174
      %p183 = scmp.eq.s32.totalorder %s25, 1
      %p184 = por %p182, %p183
      %p185 = scmp.ne.s32.totalorder %s174, %s175
      %p186 = scmp.eq.s32.totalorder %s25, 0
      %p187 = por %p185, %p186
      %p188 = scmp.ne.s32.totalorder %s174, %s175
      %p189 = scmp.eq.s32.totalorder %s26, 1
      %p190 = por %p188, %p189
      %p192 = scmp.ne.s32.totalorder %s175, %s191
      %p193 = scmp.eq.s32.totalorder %s26, 0
      %p194 = por %p192, %p193
      %s195 = ssub.s32 %s20, %s27
      %p196 = scmp.eq.s32.totalorder %s195, 0
      %s198 = sadd.s32 %s197, 1
      %s199 = scalar_select %p196, %s197, %s198
      %p202 = pneg %p196
      %p203 = scmp.eq.s32.totalorder %s20, 1
      %p204 = por %p202, %p203
      %p205 = scmp.ne.s32.totalorder %s197, %s200
      %p206 = scmp.eq.s32.totalorder %s20, 0
      %p207 = por %p205, %p206
      %p208 = scmp.ne.s32.totalorder %s197, %s200
      %p209 = scmp.eq.s32.totalorder %s25, 1
      %p210 = por %p208, %p209
      %p211 = scmp.ne.s32.totalorder %s200, %s201
      %p212 = scmp.eq.s32.totalorder %s25, 0
      %p213 = por %p211, %p212
      %p214 = scmp.ne.s32.totalorder %s200, %s201
      %p215 = scmp.eq.s32.totalorder %s26, 1
      %p216 = por %p214, %p215
      %p218 = scmp.ne.s32.totalorder %s201, %s217
      %p219 = scmp.eq.s32.totalorder %s26, 0
      %p220 = por %p218, %p219
      %p221 = scmp.le.s32.totalorder 1, %s20
      %p222 = scmp.lt.s32.totalorder %s20, 3
      %p223 = pnand %p221, %p222
      %p224 = pneg %p223
      // Predicated region
      $region9: #{tpu_custom_call.1} parent=5 // pred_check
        _
      $region10: #{tpu_custom_call.1} parent=5 // pred_check_branch
        %226 = sbr.rel (%p223) target = $region12
      $region11: #{tpu_custom_call.1} parent=5 // pred_region
        %s227 = ssub.s32 %s20, 1
        // Predicated region
        $region13: #{tpu_custom_call.1} parent=11 // pred_check
          %p228 = pneg %p119
        $region14: #{tpu_custom_call.1} parent=11 // pred_check_branch
          %230 = sbr.rel (%p228) target = $region16
        $region15: #{tpu_custom_call.1} parent=11 // pred_region
          _
        $region16: #{tpu_custom_call.1} parent=11 // pred_fallthru
          _
        // Predicated region
        $region17: #{tpu_custom_call.1} parent=11 // pred_check
          %p231 = pneg %p140
        $region18: #{tpu_custom_call.1} parent=11 // pred_check_branch
          %233 = sbr.rel (%p231) target = $region20
        $region19: #{tpu_custom_call.1} parent=11 // pred_region
          _
        $region20: #{tpu_custom_call.1} parent=11 // pred_fallthru
          _
        // Predicated region
        $region21: #{tpu_custom_call.1} parent=11 // pred_check
          %p234 = pneg %p161
        $region22: #{tpu_custom_call.1} parent=11 // pred_check_branch
          %236 = sbr.rel (%p234) target = $region24
        $region23: #{tpu_custom_call.1} parent=11 // pred_region
          _
        $region24: #{tpu_custom_call.1} parent=11 // pred_fallthru
          _
      $region12: #{tpu_custom_call.1} parent=5 // pred_fallthru
        _
      %p237 = scmp.lt.s32.totalorder %s20, 2
      // Predicated region
      $region25: #{tpu_custom_call.1} parent=5 // pred_check
        %p238 = pneg %p237
      $region26: #{tpu_custom_call.1} parent=5 // pred_check_branch
        %240 = sbr.rel (%p238) target = $region28
      $region27: #{tpu_custom_call.1} parent=5 // pred_region
        // Predicated region
        $region29: #{tpu_custom_call.1} parent=27 // pred_check
          %p241 = pneg %p40
        $region30: #{tpu_custom_call.1} parent=27 // pred_check_branch
          %243 = sbr.rel (%p241) target = $region32
        $region31: #{tpu_custom_call.1} parent=27 // pred_region
          %s244 = smul.u32 9, %s20
          %p245 = scmp.lt.s32.totalorder %s244, 17
          %s246 = scalar_select %p245, %s244, 17
          %s247 = smul.addr %s246, 4
          %s248 = scalar_lea.vmem %s0, %s247
          %s249 = smul.u32 9, %s20
        $region32: #{tpu_custom_call.1} parent=27 // pred_fallthru
          _
        // Predicated region
        $region33: #{tpu_custom_call.1} parent=27 // pred_check
          %p250 = pneg %p66
        $region34: #{tpu_custom_call.1} parent=27 // pred_check_branch
          %252 = sbr.rel (%p250) target = $region36
        $region35: #{tpu_custom_call.1} parent=27 // pred_region
          %s253 = smul.u32 9, %s20
          %p254 = scmp.lt.s32.totalorder %s253, 17
          %s255 = scalar_select %p254, %s253, 17
          %s256 = smul.addr %s255, 4
          %s257 = scalar_lea.vmem %s1, %s256
          %s258 = smul.u32 9, %s20
        $region36: #{tpu_custom_call.1} parent=27 // pred_fallthru
          _
        // Predicated region
        $region37: #{tpu_custom_call.1} parent=27 // pred_check
          %p259 = pneg %p92
        $region38: #{tpu_custom_call.1} parent=27 // pred_check_branch
          %261 = sbr.rel (%p259) target = $region40
        $region39: #{tpu_custom_call.1} parent=27 // pred_region
          %s262 = smul.u32 9, %s20
          %p263 = scmp.lt.s32.totalorder %s262, 17
          %s264 = scalar_select %p263, %s262, 17
          %s265 = smul.addr %s264, 4
          %s266 = scalar_lea.vmem %s2, %s265
          %s267 = smul.u32 9, %s20
        $region40: #{tpu_custom_call.1} parent=27 // pred_fallthru
          _
      $region28: #{tpu_custom_call.1} parent=5 // pred_fallthru
        _
      %p268 = scmp.le.s32.totalorder 1, %s20
      %p269 = scmp.lt.s32.totalorder %s20, 3
      %p270 = pnand %p268, %p269
      %p271 = pneg %p270
      // Predicated region
      $region41: #{tpu_custom_call.1} parent=5 // pred_check
        _
      $region42: #{tpu_custom_call.1} parent=5 // pred_check_branch
        %273 = sbr.rel (%p270) target = $region44
      $region43: #{tpu_custom_call.1} parent=5 // pred_region
        %s274 = ssub.s32 %s20, 1
        %s275 = smul.u32 9, %s25
        %p276 = scmp.lt.s32.totalorder %s275, 17
        %s277 = scalar_select %p276, %s275, 17
        %s278 = smul.addr %s277, 4
        %s279 = scalar_lea.vmem %s0, %s278
        %p280 = pneg %p46
        %p281 = pneg %p43
        %s282 = smul.u32 9, %s25
        %p283 = scmp.lt.s32.totalorder %s282, 17
        %s284 = scalar_select %p283, %s282, 17
        %s285 = smul.addr %s284, 4
        %s286 = scalar_lea.vmem %s1, %s285
        %p287 = pneg %p72
        %p288 = pneg %p69
        %s289 = smul.u32 9, %s25
        %p290 = scmp.lt.s32.totalorder %s289, 17
        %s291 = scalar_select %p290, %s289, 17
        %s292 = smul.addr %s291, 4
        %s293 = scalar_lea.vmem %s2, %s292
        %p294 = pneg %p98
        %p295 = pneg %p95
        %p296 = pneg %p119
        %p297 = pneg %p116
        %p298 = pneg %p140
        %p299 = pneg %p137
        %p300 = pneg %p161
        %p301 = pneg %p158
        %p302 = pneg %p187
        %p303 = pneg %p184
        %s304 = sand.u32 %s174, 1
        %s305 = scalar_lea.sflag [#allocation3], %s304
        %s306 = sand.u32 %s174, 1
        %s307 = smul.addr %s306, 72
        %s308 = scalar_lea.vmem [#allocation2], %s307
        %p309 = pneg %p213
        %p310 = pneg %p210
        %s311 = sand.u32 %s200, 1
        %s312 = scalar_lea.sflag [#allocation5], %s311
        %s313 = sand.u32 %s200, 1
        %s314 = smul.addr %s313, 72
        %s315 = scalar_lea.vmem [#allocation4], %s314
        %s316 = smul.u32 9, %s25
        %p317 = scmp.lt.s32.totalorder %s316, 17
        %s318 = scalar_select %p317, %s316, 17
        %s319 = smul.addr %s318, 4
        %s320 = scalar_lea.vmem %s0, %s319
        %s321 = smul.u32 9, %s25
        %s322 = smul.u32 9, %s25
        %p323 = scmp.lt.s32.totalorder %s322, 17
        %s324 = scalar_select %p323, %s322, 17
        %s325 = smul.addr %s324, 4
        %s326 = scalar_lea.vmem %s1, %s325
        %s327 = smul.u32 9, %s25
        %s328 = smul.u32 9, %s25
        %p329 = scmp.lt.s32.totalorder %s328, 17
        %s330 = scalar_select %p329, %s328, 17
        %s331 = smul.addr %s330, 4
        %s332 = scalar_lea.vmem %s2, %s331
        %s333 = smul.u32 9, %s25
        %s334 = smul.u32 9, %s25
        %s335 = smul.u32 9, %s25
        %v337 = vld [vmem:[%s320] sm:$0xf]
        %v338 = vld [vmem:[%s320 + $0x4] sm:$0xf]
        %v339 = vld [vmem:[%s320 + $0x8] sm:$0xf]
        %v340 = vld [vmem:[%s320 + $0xc] sm:$0xf]
        %v341 = vld [vmem:[%s320 + $0x10] sm:$0xf]
        %v342 = vld [vmem:[%s320 + $0x14] sm:$0xf]
        %v343 = vld [vmem:[%s320 + $0x18] sm:$0xf]
        %v344 = vld [vmem:[%s320 + $0x1c] sm:$0xf]
        %v345 = vld [vmem:[%s320 + $0x20] sm:$0xf]
        %v346 = vld [vmem:[%s3] sm:$0xf]
        %v347 = vld [vmem:[%s4] sm:$0x3]
        %v348 = vld [vmem:[%s326] sm:$0xf]
        %v349 = vld [vmem:[%s326 + $0x4] sm:$0xf]
        %v350 = vld [vmem:[%s326 + $0x8] sm:$0xf]
        %v351 = vld [vmem:[%s326 + $0xc] sm:$0xf]
        %v352 = vld [vmem:[%s326 + $0x10] sm:$0xf]
        %v353 = vld [vmem:[%s326 + $0x14] sm:$0xf]
        %v354 = vld [vmem:[%s326 + $0x18] sm:$0xf]
        %v355 = vld [vmem:[%s326 + $0x1c] sm:$0xf]
        %v356 = vld [vmem:[%s326 + $0x20] sm:$0xf]
        %s357 = scalar_lea.vmem %s3, 4
        %v358 = vld [vmem:[%s357] sm:$0xf]
        %v368 = vunpack.c.l.b16 %v348
        %v369 = vunpack.c.l.b16 %v349
        %v370 = vunpack.c.l.b16 %v350
        %v371 = vunpack.c.l.b16 %v351
        %v372 = vunpack.c.l.b16 %v352
        %v373 = vunpack.c.l.b16 %v353
        %v374 = vunpack.c.l.b16 %v354
        %v375 = vunpack.c.l.b16 %v355
        %v376 = vunpack.c.l.b16 %v356
        %v377 = vpack.c.b16 %v369, %v368
        %v378 = vpack.c.b16 %v371, %v370
        %v379 = vpack.c.b16 %v373, %v372
        %v380 = vpack.c.b16 %v375, %v374
        %v381 = vpack.c.b16 %v376, %v376
        %vm382 = vcmask 64512
        %v384 = vsel %vm382, %v377, 0
        %v387 = vsel %vm382, %v378, 0
        %v390 = vsel %vm382, %v379, 0
        %v393 = vsel %vm382, %v380, 0
        %v396 = vsel %vm382, %v381, 0
        %vm398 = vcmask 1043456
        %v400 = vsel %vm398, %v358, 0
        %402 = vmatprep.subr.bf16.mxu0 0
        %403 = vmatpush1.bf16.msra.mxu0 %v400
        %404 = vmatprep.subr.bf16.mxu0 0
        %405 = vmatpush1.bf16.msra.mxu0 0
        %406 = vmatprep.subr.bf16.mxu0 0
        %407 = vmatpush1.bf16.msra.mxu0 0
        %408 = vmatprep.subr.bf16.mxu0 0
        %409 = vmatpush1.bf16.msra.mxu0 0
        %410 = vmatprep.subr.bf16.mxu0 0
        %411 = vmatpush1.bf16.msra.mxu0 0
        %412 = vmatprep.subr.bf16.mxu0 0
        %413 = vmatpush1.bf16.msra.mxu0 0
        %414 = vmatprep.subr.bf16.mxu0 0
        %415 = vmatpush1.bf16.msra.mxu0 0
        %416 = vmatprep.subr.bf16.mxu0 0
        %417 = vmatpush1.bf16.msra.mxu0 0
        %418 = vmatprep.subr.bf16.mxu0 0
        %419 = vmatpush1.bf16.msra.mxu0 0
        %420 = vmatprep.subr.bf16.mxu0 0
        %421 = vmatpush1.bf16.msra.mxu0 0
        %422 = vmatprep.subr.bf16.mxu0 0
        %423 = vmatpush1.bf16.msra.mxu0 0
        %424 = vmatprep.subr.bf16.mxu0 0
        %425 = vmatpush1.bf16.msra.mxu0 0
        %426 = vmatprep.subr.bf16.mxu0 0
        %427 = vmatpush1.bf16.msra.mxu0 0
        %428 = vmatprep.subr.bf16.mxu0 0
        %429 = vmatpush1.bf16.msra.mxu0 0
        %430 = vmatprep.subr.bf16.mxu0 0
        %431 = vmatpush1.bf16.msra.mxu0 0
        %432 = vmatprep.subr.bf16.mxu0 0
        %433 = vmatpush1.bf16.msra.mxu0 0
        %434 = vmatprep.mubr.bf16.mxu0 0
        %435 = vmatmul.mubr.bf16.gmra.mrb[0].mxu0 %v384
        %v436 = vpop.f32.mrb[0].mxu0
        %v437 = vadd.f32 0.0, %v436
        %v438 = vpop.f32.mrb[0].mxu0
        %v439 = vpop.f32.mrb[0].mxu0
        %v440 = vadd.f32 0.0, %v439
        %v441 = vpop.f32.mrb[0].mxu0
        %442 = vmatprep.mubr.bf16.mxu0 0
        %443 = vmatmul.mubr.bf16.gmra.mrb[0].mxu0 %v387
        %v444 = vpop.f32.mrb[0].mxu0
        %v445 = vadd.f32 0.0, %v444
        %v446 = vpop.f32.mrb[0].mxu0
        %v447 = vpop.f32.mrb[0].mxu0
        %v448 = vadd.f32 0.0, %v447
        %v449 = vpop.f32.mrb[0].mxu0
        %450 = vmatprep.mubr.bf16.mxu0 0
        %451 = vmatmul.mubr.bf16.gmra.mrb[0].mxu0 %v390
        %v452 = vpop.f32.mrb[0].mxu0
        %v453 = vadd.f32 0.0, %v452
        %v454 = vpop.f32.mrb[0].mxu0
        %v455 = vpop.f32.mrb[0].mxu0
        %v456 = vadd.f32 0.0, %v455
        %v457 = vpop.f32.mrb[0].mxu0
        %458 = vmatprep.mubr.bf16.mxu0 0
        %459 = vmatmul.mubr.bf16.gmra.mrb[0].mxu0 %v393
        %v460 = vpop.f32.mrb[0].mxu0
        %v461 = vadd.f32 0.0, %v460
        %v462 = vpop.f32.mrb[0].mxu0
        %v463 = vpop.f32.mrb[0].mxu0
        %v464 = vadd.f32 0.0, %v463
        %v465 = vpop.f32.mrb[0].mxu0
        %466 = vmatprep.mubr.bf16.mxu0 0
        %467 = vmatmul.mubr.bf16.gmra.mrb[0].mxu0 %v396
        %v468 = vpop.f32.mrb[0].mxu0
        %v469 = vadd.f32 0.0, %v468
        %v470 = vpop.f32.mrb[0].mxu0
        %v471 = vpop.f32.mrb[0].mxu0
        %v472 = vpop.f32.mrb[0].mxu0
        %473 = vdwg.mxu0
        %v483 = vunpack.c.l.b16 %v337
        %v484 = vunpack.c.l.b16 %v338
        %v485 = vunpack.c.l.b16 %v339
        %v486 = vunpack.c.l.b16 %v340
        %v487 = vunpack.c.l.b16 %v341
        %v488 = vunpack.c.l.b16 %v342
        %v489 = vunpack.c.l.b16 %v343
        %v490 = vunpack.c.l.b16 %v344
        %v491 = vunpack.c.l.b16 %v345
        %v492 = vpack.c.b16 %v484, %v483
        %v493 = vpack.c.b16 %v486, %v485
        %v494 = vpack.c.b16 %v488, %v487
        %v495 = vpack.c.b16 %v490, %v489
        %v496 = vpack.c.b16 %v491, %v491
        %v498 = vsel %vm382, %v492, 0
        %v501 = vsel %vm382, %v493, 0
        %v504 = vsel %vm382, %v494, 0
        %v507 = vsel %vm382, %v495, 0
        %v510 = vsel %vm382, %v496, 0
        %v513 = vsel %vm398, %v346, 0
        %515 = vmatprep.subr.bf16.mxu0 0
        %516 = vmatpush1.bf16.msra.mxu0 %v513
        %517 = vmatprep.subr.bf16.mxu0 0
        %518 = vmatpush1.bf16.msra.mxu0 0
        %519 = vmatprep.subr.bf16.mxu0 0
        %520 = vmatpush1.bf16.msra.mxu0 0
        %521 = vmatprep.subr.bf16.mxu0 0
        %522 = vmatpush1.bf16.msra.mxu0 0
        %523 = vmatprep.subr.bf16.mxu0 0
        %524 = vmatpush1.bf16.msra.mxu0 0
        %525 = vmatprep.subr.bf16.mxu0 0
        %526 = vmatpush1.bf16.msra.mxu0 0
        %527 = vmatprep.subr.bf16.mxu0 0
        %528 = vmatpush1.bf16.msra.mxu0 0
        %529 = vmatprep.subr.bf16.mxu0 0
        %530 = vmatpush1.bf16.msra.mxu0 0
        %531 = vmatprep.subr.bf16.mxu0 0
        %532 = vmatpush1.bf16.msra.mxu0 0
        %533 = vmatprep.subr.bf16.mxu0 0
        %534 = vmatpush1.bf16.msra.mxu0 0
        %535 = vmatprep.subr.bf16.mxu0 0
        %536 = vmatpush1.bf16.msra.mxu0 0
        %537 = vmatprep.subr.bf16.mxu0 0
        %538 = vmatpush1.bf16.msra.mxu0 0
        %539 = vmatprep.subr.bf16.mxu0 0
        %540 = vmatpush1.bf16.msra.mxu0 0
        %541 = vmatprep.subr.bf16.mxu0 0
        %542 = vmatpush1.bf16.msra.mxu0 0
        %543 = vmatprep.subr.bf16.mxu0 0
        %544 = vmatpush1.bf16.msra.mxu0 0
        %545 = vmatprep.subr.bf16.mxu0 0
        %546 = vmatpush1.bf16.msra.mxu0 0
        %547 = vmatprep.mubr.bf16.mxu0 0
        %548 = vmatmul.mubr.bf16.gmra.mrb[0].mxu0 %v498
        %v549 = vpop.f32.mrb[0].mxu0
        %v550 = vadd.f32 %v437, %v549
        %v551 = vpop.f32.mrb[0].mxu0
        %v552 = vpop.f32.mrb[0].mxu0
        %v553 = vadd.f32 %v440, %v552
        %v554 = vpop.f32.mrb[0].mxu0
        %555 = vmatprep.mubr.bf16.mxu0 0
        %556 = vmatmul.mubr.bf16.gmra.mrb[0].mxu0 %v501
        %v557 = vpop.f32.mrb[0].mxu0
        %v558 = vadd.f32 %v445, %v557
        %v559 = vpop.f32.mrb[0].mxu0
        %v560 = vpop.f32.mrb[0].mxu0
        %v561 = vadd.f32 %v448, %v560
        %v562 = vpop.f32.mrb[0].mxu0
        %563 = vmatprep.mubr.bf16.mxu0 0
        %564 = vmatmul.mubr.bf16.gmra.mrb[0].mxu0 %v504
        %v565 = vpop.f32.mrb[0].mxu0
        %v566 = vadd.f32 %v453, %v565
        %v567 = vpop.f32.mrb[0].mxu0
        %v568 = vpop.f32.mrb[0].mxu0
        %v569 = vadd.f32 %v456, %v568
        %v570 = vpop.f32.mrb[0].mxu0
        %571 = vmatprep.mubr.bf16.mxu0 0
        %572 = vmatmul.mubr.bf16.gmra.mrb[0].mxu0 %v507
        %v573 = vpop.f32.mrb[0].mxu0
        %v574 = vadd.f32 %v461, %v573
        %v575 = vpop.f32.mrb[0].mxu0
        %v576 = vpop.f32.mrb[0].mxu0
        %v577 = vadd.f32 %v464, %v576
        %v578 = vpop.f32.mrb[0].mxu0
        %579 = vmatprep.mubr.bf16.mxu0 0
        %580 = vmatmul.mubr.bf16.gmra.mrb[0].mxu0 %v510
        %v581 = vpop.f32.mrb[0].mxu0
        %v582 = vadd.f32 %v469, %v581
        %v583 = vpop.f32.mrb[0].mxu0
        %v584 = vpop.f32.mrb[0].mxu0
        %v585 = vpop.f32.mrb[0].mxu0
        %586 = vdwg.mxu0
        %s587 = scalar_lea.vmem %s4, 2
        %v588 = vld [vmem:[%s587] sm:$0x3]
        %vm589 = vcmask 31744
        %v590 = vsel %vm589, %v377, 0
        %v592 = vsel %vm589, %v378, 0
        %v594 = vsel %vm589, %v379, 0
        %v596 = vsel %vm589, %v380, 0
        %v598 = vsel %vm589, %v381, 0
        %vm600 = vcmask 1041408
        %v602 = vsel %vm600, %v588, 0
        %604 = vmatprep.subr.bf16.mxu0 0
        %605 = vmatpush1.bf16.msra.mxu0 %v602
        %606 = vmatprep.subr.bf16.mxu0 0
        %607 = vmatpush1.bf16.msra.mxu0 0
        %608 = vmatprep.subr.bf16.mxu0 0
        %609 = vmatpush1.bf16.msra.mxu0 0
        %610 = vmatprep.subr.bf16.mxu0 0
        %611 = vmatpush1.bf16.msra.mxu0 0
        %612 = vmatprep.subr.bf16.mxu0 0
        %613 = vmatpush1.bf16.msra.mxu0 0
        %614 = vmatprep.subr.bf16.mxu0 0
        %615 = vmatpush1.bf16.msra.mxu0 0
        %616 = vmatprep.subr.bf16.mxu0 0
        %617 = vmatpush1.bf16.msra.mxu0 0
        %618 = vmatprep.subr.bf16.mxu0 0
        %619 = vmatpush1.bf16.msra.mxu0 0
        %620 = vmatprep.subr.bf16.mxu0 0
        %621 = vmatpush1.bf16.msra.mxu0 0
        %622 = vmatprep.subr.bf16.mxu0 0
        %623 = vmatpush1.bf16.msra.mxu0 0
        %624 = vmatprep.subr.bf16.mxu0 0
        %625 = vmatpush1.bf16.msra.mxu0 0
        %626 = vmatprep.subr.bf16.mxu0 0
        %627 = vmatpush1.bf16.msra.mxu0 0
        %628 = vmatprep.subr.bf16.mxu0 0
        %629 = vmatpush1.bf16.msra.mxu0 0
        %630 = vmatprep.subr.bf16.mxu0 0
        %631 = vmatpush1.bf16.msra.mxu0 0
        %632 = vmatprep.subr.bf16.mxu0 0
        %633 = vmatpush1.bf16.msra.mxu0 0
        %634 = vmatprep.subr.bf16.mxu0 0
        %635 = vmatpush1.bf16.msra.mxu0 0
        %636 = vmatprep.mubr.bf16.mxu0 0
        %637 = vmatmul.mubr.bf16.gmra.mrb[0].mxu0 %v590
        %v638 = vpop.f32.mrb[0].mxu0
        %v639 = vadd.f32 0.0, %v638
        %v640 = vpop.f32.mrb[0].mxu0
        %v641 = vpop.f32.mrb[0].mxu0
        %v642 = vadd.f32 0.0, %v641
        %v643 = vpop.f32.mrb[0].mxu0
        %644 = vmatprep.mubr.bf16.mxu0 0
        %645 = vmatmul.mubr.bf16.gmra.mrb[0].mxu0 %v592
        %v646 = vpop.f32.mrb[0].mxu0
        %v647 = vadd.f32 0.0, %v646
        %v648 = vpop.f32.mrb[0].mxu0
        %v649 = vpop.f32.mrb[0].mxu0
        %v650 = vadd.f32 0.0, %v649
        %v651 = vpop.f32.mrb[0].mxu0
        %652 = vmatprep.mubr.bf16.mxu0 0
        %653 = vmatmul.mubr.bf16.gmra.mrb[0].mxu0 %v594
        %v654 = vpop.f32.mrb[0].mxu0
        %v655 = vadd.f32 0.0, %v654
        %v656 = vpop.f32.mrb[0].mxu0
        %v657 = vpop.f32.mrb[0].mxu0
        %v658 = vadd.f32 0.0, %v657
        %v659 = vpop.f32.mrb[0].mxu0
        %660 = vmatprep.mubr.bf16.mxu0 0
        %661 = vmatmul.mubr.bf16.gmra.mrb[0].mxu0 %v596
        %v662 = vpop.f32.mrb[0].mxu0
        %v663 = vadd.f32 0.0, %v662
        %v664 = vpop.f32.mrb[0].mxu0
        %v665 = vpop.f32.mrb[0].mxu0
        %v666 = vadd.f32 0.0, %v665
        %v667 = vpop.f32.mrb[0].mxu0
        %668 = vmatprep.mubr.bf16.mxu0 0
        %669 = vmatmul.mubr.bf16.gmra.mrb[0].mxu0 %v598
        %v670 = vpop.f32.mrb[0].mxu0
        %v671 = vadd.f32 0.0, %v670
        %v672 = vpop.f32.mrb[0].mxu0
        %v673 = vpop.f32.mrb[0].mxu0
        %v674 = vpop.f32.mrb[0].mxu0
        %675 = vdwg.mxu0
        %v676 = vsel %vm589, %v492, 0
        %v678 = vsel %vm589, %v493, 0
        %v680 = vsel %vm589, %v494, 0
        %v682 = vsel %vm589, %v495, 0
        %v684 = vsel %vm589, %v496, 0
        %v687 = vsel %vm600, %v347, 0
        %689 = vmatprep.subr.bf16.mxu0 0
        %690 = vmatpush1.bf16.msra.mxu0 %v687
        %691 = vmatprep.subr.bf16.mxu0 0
        %692 = vmatpush1.bf16.msra.mxu0 0
        %693 = vmatprep.subr.bf16.mxu0 0
        %694 = vmatpush1.bf16.msra.mxu0 0
        %695 = vmatprep.subr.bf16.mxu0 0
        %696 = vmatpush1.bf16.msra.mxu0 0
        %697 = vmatprep.subr.bf16.mxu0 0
        %698 = vmatpush1.bf16.msra.mxu0 0
        %699 = vmatprep.subr.bf16.mxu0 0
        %700 = vmatpush1.bf16.msra.mxu0 0
        %701 = vmatprep.subr.bf16.mxu0 0
        %702 = vmatpush1.bf16.msra.mxu0 0
        %703 = vmatprep.subr.bf16.mxu0 0
        %704 = vmatpush1.bf16.msra.mxu0 0
        %705 = vmatprep.subr.bf16.mxu0 0
        %706 = vmatpush1.bf16.msra.mxu0 0
        %707 = vmatprep.subr.bf16.mxu0 0
        %708 = vmatpush1.bf16.msra.mxu0 0
        %709 = vmatprep.subr.bf16.mxu0 0
        %710 = vmatpush1.bf16.msra.mxu0 0
        %711 = vmatprep.subr.bf16.mxu0 0
        %712 = vmatpush1.bf16.msra.mxu0 0
        %713 = vmatprep.subr.bf16.mxu0 0
        %714 = vmatpush1.bf16.msra.mxu0 0
        %715 = vmatprep.subr.bf16.mxu0 0
        %716 = vmatpush1.bf16.msra.mxu0 0
        %717 = vmatprep.subr.bf16.mxu0 0
        %718 = vmatpush1.bf16.msra.mxu0 0
        %719 = vmatprep.subr.bf16.mxu0 0
        %720 = vmatpush1.bf16.msra.mxu0 0
        %721 = vmatprep.mubr.bf16.mxu0 0
        %722 = vmatmul.mubr.bf16.gmra.mrb[0].mxu0 %v676
        %v723 = vpop.f32.mrb[0].mxu0
        %v724 = vadd.f32 %v639, %v723
        %v725 = vpop.f32.mrb[0].mxu0
        %v726 = vpop.f32.mrb[0].mxu0
        %v727 = vadd.f32 %v642, %v726
        %v728 = vpop.f32.mrb[0].mxu0
        %729 = vmatprep.mubr.bf16.mxu0 0
        %730 = vmatmul.mubr.bf16.gmra.mrb[0].mxu0 %v678
        %v731 = vpop.f32.mrb[0].mxu0
        %v732 = vadd.f32 %v647, %v731
        %v733 = vpop.f32.mrb[0].mxu0
        %v734 = vpop.f32.mrb[0].mxu0
        %v735 = vadd.f32 %v650, %v734
        %v736 = vpop.f32.mrb[0].mxu0
        %737 = vmatprep.mubr.bf16.mxu0 0
        %738 = vmatmul.mubr.bf16.gmra.mrb[0].mxu0 %v680
        %v739 = vpop.f32.mrb[0].mxu0
        %v740 = vadd.f32 %v655, %v739
        %v741 = vpop.f32.mrb[0].mxu0
        %v742 = vpop.f32.mrb[0].mxu0
        %v743 = vadd.f32 %v658, %v742
        %v744 = vpop.f32.mrb[0].mxu0
        %745 = vmatprep.mubr.bf16.mxu0 0
        %746 = vmatmul.mubr.bf16.gmra.mrb[0].mxu0 %v682
        %v747 = vpop.f32.mrb[0].mxu0
        %v748 = vadd.f32 %v663, %v747
        %v749 = vpop.f32.mrb[0].mxu0
        %v750 = vpop.f32.mrb[0].mxu0
        %v751 = vadd.f32 %v666, %v750
        %v752 = vpop.f32.mrb[0].mxu0
        %753 = vmatprep.mubr.bf16.mxu0 0
        %754 = vmatmul.mubr.bf16.gmra.mrb[0].mxu0 %v684
        %v755 = vpop.f32.mrb[0].mxu0
        %v756 = vadd.f32 %v671, %v755
        %v757 = vpop.f32.mrb[0].mxu0
        %v758 = vpop.f32.mrb[0].mxu0
        %v759 = vpop.f32.mrb[0].mxu0
        %760 = vdwg.mxu0
        %v761 = vld [vmem:[%s332] sm:$0xf]
        %v762 = vld [vmem:[%s332 + $0x4] sm:$0xf]
        %v763 = vld [vmem:[%s332 + $0x8] sm:$0xf]
        %v764 = vld [vmem:[%s332 + $0xc] sm:$0xf]
        %v765 = vld [vmem:[%s332 + $0x10] sm:$0xf]
        %v766 = vld [vmem:[%s332 + $0x14] sm:$0xf]
        %v767 = vld [vmem:[%s332 + $0x18] sm:$0xf]
        %v768 = vld [vmem:[%s332 + $0x1c] sm:$0xf]
        %v769 = vld [vmem:[%s332 + $0x20] sm:$0xf]
        %s770 = scalar_lea.vmem %s3, 8
        %v771 = vld [vmem:[%s770] sm:$0xf]
        %v781 = vunpack.c.l.b16 %v761
        %v782 = vunpack.c.l.b16 %v762
        %v783 = vunpack.c.l.b16 %v763
        %v784 = vunpack.c.l.b16 %v764
        %v785 = vunpack.c.l.b16 %v765
        %v786 = vunpack.c.l.b16 %v766
        %v787 = vunpack.c.l.b16 %v767
        %v788 = vunpack.c.l.b16 %v768
        %v789 = vunpack.c.l.b16 %v769
        %v790 = vpack.c.b16 %v782, %v781
        %v791 = vpack.c.b16 %v784, %v783
        %v792 = vpack.c.b16 %v786, %v785
        %v793 = vpack.c.b16 %v788, %v787
        %v794 = vpack.c.b16 %v789, %v789
        %v796 = vsel %vm382, %v790, 0
        %v799 = vsel %vm382, %v791, 0
        %v802 = vsel %vm382, %v792, 0
        %v805 = vsel %vm382, %v793, 0
        %v808 = vsel %vm382, %v794, 0
        %v811 = vsel %vm398, %v771, 0
        %813 = vmatprep.subr.bf16.mxu0 0
        %814 = vmatpush1.bf16.msra.mxu0 %v811
        %815 = vmatprep.subr.bf16.mxu0 0
        %816 = vmatpush1.bf16.msra.mxu0 0
        %817 = vmatprep.subr.bf16.mxu0 0
        %818 = vmatpush1.bf16.msra.mxu0 0
        %819 = vmatprep.subr.bf16.mxu0 0
        %820 = vmatpush1.bf16.msra.mxu0 0
        %821 = vmatprep.subr.bf16.mxu0 0
        %822 = vmatpush1.bf16.msra.mxu0 0
        %823 = vmatprep.subr.bf16.mxu0 0
        %824 = vmatpush1.bf16.msra.mxu0 0
        %825 = vmatprep.subr.bf16.mxu0 0
        %826 = vmatpush1.bf16.msra.mxu0 0
        %827 = vmatprep.subr.bf16.mxu0 0
        %828 = vmatpush1.bf16.msra.mxu0 0
        %829 = vmatprep.subr.bf16.mxu0 0
        %830 = vmatpush1.bf16.msra.mxu0 0
        %831 = vmatprep.subr.bf16.mxu0 0
        %832 = vmatpush1.bf16.msra.mxu0 0
        %833 = vmatprep.subr.bf16.mxu0 0
        %834 = vmatpush1.bf16.msra.mxu0 0
        %835 = vmatprep.subr.bf16.mxu0 0
        %836 = vmatpush1.bf16.msra.mxu0 0
        %837 = vmatprep.subr.bf16.mxu0 0
        %838 = vmatpush1.bf16.msra.mxu0 0
        %839 = vmatprep.subr.bf16.mxu0 0
        %840 = vmatpush1.bf16.msra.mxu0 0
        %841 = vmatprep.subr.bf16.mxu0 0
        %842 = vmatpush1.bf16.msra.mxu0 0
        %843 = vmatprep.subr.bf16.mxu0 0
        %844 = vmatpush1.bf16.msra.mxu0 0
        %845 = vmatprep.mubr.bf16.mxu0 0
        %846 = vmatmul.mubr.bf16.gmra.mrb[0].mxu0 %v796
        %v847 = vpop.f32.mrb[0].mxu0
        %v848 = vadd.f32 0.0, %v847
        %v849 = vpop.f32.mrb[0].mxu0
        %v850 = vpop.f32.mrb[0].mxu0
        %v851 = vadd.f32 0.0, %v850
        %v852 = vpop.f32.mrb[0].mxu0
        %853 = vmatprep.mubr.bf16.mxu0 0
        %854 = vmatmul.mubr.bf16.gmra.mrb[0].mxu0 %v799
        %v855 = vpop.f32.mrb[0].mxu0
        %v856 = vadd.f32 0.0, %v855
        %v857 = vpop.f32.mrb[0].mxu0
        %v858 = vpop.f32.mrb[0].mxu0
        %v859 = vadd.f32 0.0, %v858
        %v860 = vpop.f32.mrb[0].mxu0
        %861 = vmatprep.mubr.bf16.mxu0 0
        %862 = vmatmul.mubr.bf16.gmra.mrb[0].mxu0 %v802
        %v863 = vpop.f32.mrb[0].mxu0
        %v864 = vadd.f32 0.0, %v863
        %v865 = vpop.f32.mrb[0].mxu0
        %v866 = vpop.f32.mrb[0].mxu0
        %v867 = vadd.f32 0.0, %v866
        %v868 = vpop.f32.mrb[0].mxu0
        %869 = vmatprep.mubr.bf16.mxu0 0
        %870 = vmatmul.mubr.bf16.gmra.mrb[0].mxu0 %v805
        %v871 = vpop.f32.mrb[0].mxu0
        %v872 = vadd.f32 0.0, %v871
        %v873 = vpop.f32.mrb[0].mxu0
        %v874 = vpop.f32.mrb[0].mxu0
        %v875 = vadd.f32 0.0, %v874
        %v876 = vpop.f32.mrb[0].mxu0
        %877 = vmatprep.mubr.bf16.mxu0 0
        %878 = vmatmul.mubr.bf16.gmra.mrb[0].mxu0 %v808
        %v879 = vpop.f32.mrb[0].mxu0
        %v880 = vadd.f32 0.0, %v879
        %v881 = vpop.f32.mrb[0].mxu0
        %v882 = vpop.f32.mrb[0].mxu0
        %v883 = vpop.f32.mrb[0].mxu0
        %884 = vdwg.mxu0
        %v885 = vadd.f32 %v550, %v848
        %v886 = vadd.f32 %v553, %v851
        %v887 = vadd.f32 %v558, %v856
        %v888 = vadd.f32 %v561, %v859
        %v889 = vadd.f32 %v566, %v864
        %v890 = vadd.f32 %v569, %v867
        %v891 = vadd.f32 %v574, %v872
        %v892 = vadd.f32 %v577, %v875
        %v893 = vadd.f32 %v582, %v880
        %s894 = scalar_lea.vmem %s4, 4
        %v895 = vld [vmem:[%s894] sm:$0x3]
        %v896 = vsel %vm589, %v790, 0
        %v898 = vsel %vm589, %v791, 0
        %v900 = vsel %vm589, %v792, 0
        %v902 = vsel %vm589, %v793, 0
        %v904 = vsel %vm589, %v794, 0
        %v907 = vsel %vm600, %v895, 0
        %909 = vmatprep.subr.bf16.mxu0 0
        %910 = vmatpush1.bf16.msra.mxu0 %v907
        %911 = vmatprep.subr.bf16.mxu0 0
        %912 = vmatpush1.bf16.msra.mxu0 0
        %913 = vmatprep.subr.bf16.mxu0 0
        %914 = vmatpush1.bf16.msra.mxu0 0
        %915 = vmatprep.subr.bf16.mxu0 0
        %916 = vmatpush1.bf16.msra.mxu0 0
        %917 = vmatprep.subr.bf16.mxu0 0
        %918 = vmatpush1.bf16.msra.mxu0 0
        %919 = vmatprep.subr.bf16.mxu0 0
        %920 = vmatpush1.bf16.msra.mxu0 0
        %921 = vmatprep.subr.bf16.mxu0 0
        %922 = vmatpush1.bf16.msra.mxu0 0
        %923 = vmatprep.subr.bf16.mxu0 0
        %924 = vmatpush1.bf16.msra.mxu0 0
        %925 = vmatprep.subr.bf16.mxu0 0
        %926 = vmatpush1.bf16.msra.mxu0 0
        %927 = vmatprep.subr.bf16.mxu0 0
        %928 = vmatpush1.bf16.msra.mxu0 0
        %929 = vmatprep.subr.bf16.mxu0 0
        %930 = vmatpush1.bf16.msra.mxu0 0
        %931 = vmatprep.subr.bf16.mxu0 0
        %932 = vmatpush1.bf16.msra.mxu0 0
        %933 = vmatprep.subr.bf16.mxu0 0
        %934 = vmatpush1.bf16.msra.mxu0 0
        %935 = vmatprep.subr.bf16.mxu0 0
        %936 = vmatpush1.bf16.msra.mxu0 0
        %937 = vmatprep.subr.bf16.mxu0 0
        %938 = vmatpush1.bf16.msra.mxu0 0
        %939 = vmatprep.subr.bf16.mxu0 0
        %940 = vmatpush1.bf16.msra.mxu0 0
        %941 = vmatprep.mubr.bf16.mxu0 0
        %942 = vmatmul.mubr.bf16.gmra.mrb[0].mxu0 %v896
        %v943 = vpop.f32.mrb[0].mxu0
        %v944 = vadd.f32 0.0, %v943
        %v945 = vpop.f32.mrb[0].mxu0
        %v946 = vpop.f32.mrb[0].mxu0
        %v947 = vadd.f32 0.0, %v946
        %v948 = vpop.f32.mrb[0].mxu0
        %949 = vmatprep.mubr.bf16.mxu0 0
        %950 = vmatmul.mubr.bf16.gmra.mrb[0].mxu0 %v898
        %v951 = vpop.f32.mrb[0].mxu0
        %v952 = vadd.f32 0.0, %v951
        %v953 = vpop.f32.mrb[0].mxu0
        %v954 = vpop.f32.mrb[0].mxu0
        %v955 = vadd.f32 0.0, %v954
        %v956 = vpop.f32.mrb[0].mxu0
        %957 = vmatprep.mubr.bf16.mxu0 0
        %958 = vmatmul.mubr.bf16.gmra.mrb[0].mxu0 %v900
        %v959 = vpop.f32.mrb[0].mxu0
        %v960 = vadd.f32 0.0, %v959
        %v961 = vpop.f32.mrb[0].mxu0
        %v962 = vpop.f32.mrb[0].mxu0
        %v963 = vadd.f32 0.0, %v962
        %v964 = vpop.f32.mrb[0].mxu0
        %965 = vmatprep.mubr.bf16.mxu0 0
        %966 = vmatmul.mubr.bf16.gmra.mrb[0].mxu0 %v902
        %v967 = vpop.f32.mrb[0].mxu0
        %v968 = vadd.f32 0.0, %v967
        %v969 = vpop.f32.mrb[0].mxu0
        %v970 = vpop.f32.mrb[0].mxu0
        %v971 = vadd.f32 0.0, %v970
        %v972 = vpop.f32.mrb[0].mxu0
        %973 = vmatprep.mubr.bf16.mxu0 0
        %974 = vmatmul.mubr.bf16.gmra.mrb[0].mxu0 %v904
        %v975 = vpop.f32.mrb[0].mxu0
        %v976 = vadd.f32 0.0, %v975
        %v977 = vpop.f32.mrb[0].mxu0
        %v978 = vpop.f32.mrb[0].mxu0
        %v979 = vpop.f32.mrb[0].mxu0
        %980 = vdwg.mxu0
        %v981 = vadd.f32 %v724, %v944
        %v982 = vadd.f32 %v727, %v947
        %v983 = vadd.f32 %v732, %v952
        %v984 = vadd.f32 %v735, %v955
        %v985 = vadd.f32 %v740, %v960
        %v986 = vadd.f32 %v743, %v963
        %v987 = vadd.f32 %v748, %v968
        %v988 = vadd.f32 %v751, %v971
        %v989 = vadd.f32 %v756, %v976
        %v990 = vld [vmem:[%s5] sm:$0x1]
        %v992 = vlaneseq
        %v993 = vshrl.u32 %v992, 7
        %v994 = vsub.s32 0, %v993
        %v995 = vrot.slane %v990, %v994
        %v997 = vadd.f32 %v885, %v995
        %v998 = vadd.f32 %v886, %v995
        %v999 = vadd.f32 %v887, %v995
        %v1000 = vadd.f32 %v888, %v995
        %v1001 = vadd.f32 %v889, %v995
        %v1002 = vadd.f32 %v890, %v995
        %v1003 = vadd.f32 %v891, %v995
        %v1004 = vadd.f32 %v892, %v995
        %v1005 = vadd.f32 %v893, %v995
        %1006 = vst [vmem:[%s308] sm:$0xff] %v997
        %1007 = vst [vmem:[%s308 + $0x8] sm:$0xff] %v998
        %1008 = vst [vmem:[%s308 + $0x10] sm:$0xff] %v999
        %1009 = vst [vmem:[%s308 + $0x18] sm:$0xff] %v1000
        %1010 = vst [vmem:[%s308 + $0x20] sm:$0xff] %v1001
        %1011 = vst [vmem:[%s308 + $0x28] sm:$0xff] %v1002
        %1012 = vst [vmem:[%s308 + $0x30] sm:$0xff] %v1003
        %1013 = vst [vmem:[%s308 + $0x38] sm:$0xff] %v1004
        %1014 = vst [vmem:[%s308 + $0x40] sm:$0xff] %v1005
        %1015 = vst [vmem:[%s315] sm:$0xff] %v981
        %1016 = vst [vmem:[%s315 + $0x8] sm:$0xff] %v982
        %1017 = vst [vmem:[%s315 + $0x10] sm:$0xff] %v983
        %1018 = vst [vmem:[%s315 + $0x18] sm:$0xff] %v984
        %1019 = vst [vmem:[%s315 + $0x20] sm:$0xff] %v985
        %1020 = vst [vmem:[%s315 + $0x28] sm:$0xff] %v986
        %1021 = vst [vmem:[%s315 + $0x30] sm:$0xff] %v987
        %1022 = vst [vmem:[%s315 + $0x38] sm:$0xff] %v988
        %1023 = vst [vmem:[%s315 + $0x40] sm:$0xff] %v989
        %s1024 = sand.u32 %s174, 1
        %s1025 = scalar_lea.sflag [#allocation3], %s1024
        %s1026 = sand.u32 %s174, 1
        %s1027 = smul.addr %s1026, 72
        %s1028 = scalar_lea.vmem [#allocation2], %s1027
        %s1029 = sand.u32 %s200, 1
        %s1030 = scalar_lea.sflag [#allocation5], %s1029
        %s1031 = sand.u32 %s200, 1
        %s1032 = smul.addr %s1031, 72
        %s1033 = scalar_lea.vmem [#allocation4], %s1032
        // Predicated region
        $region45: #{tpu_custom_call.1} parent=43 // pred_check
          %p1034 = pneg %p184
        $region46: #{tpu_custom_call.1} parent=43 // pred_check_branch
          %1036 = sbr.rel (%p1034) target = $region48
        $region47: #{tpu_custom_call.1} parent=43 // pred_region
          %s1037 = smul.u32 9, %s25
          %s1039 = ssub.s32 1152, 1152
          %1040 = vsyncadd %s1025, %s1039
          %s1041 = smul.addr %s1037, 128
          %s1042 = scalar_lea.hbm %s6, %s1041
          %s1043 = sshll.u32 %s1028, 4
          %s1044 = int_to_ptr.vmem [resolvable:$true] %s1043
          %1049 = dma.vmem_to_hbm [thread:$0]  %s1044, 1152, %s1042, %s1025, 128, 128, 8
        $region48: #{tpu_custom_call.1} parent=43 // pred_fallthru
          _
        // Predicated region
        $region49: #{tpu_custom_call.1} parent=43 // pred_check
          %p1050 = pneg %p210
        $region50: #{tpu_custom_call.1} parent=43 // pred_check_branch
          %1052 = sbr.rel (%p1050) target = $region52
        $region51: #{tpu_custom_call.1} parent=43 // pred_region
          %s1053 = smul.u32 9, %s25
          %s1055 = ssub.s32 1152, 1152
          %1056 = vsyncadd %s1030, %s1055
          %s1057 = smul.addr %s1053, 128
          %s1058 = scalar_lea.hbm %s7, %s1057
          %s1059 = sshll.u32 %s1033, 4
          %s1060 = int_to_ptr.vmem [resolvable:$true] %s1059
          %1065 = dma.vmem_to_hbm [thread:$0]  %s1060, 1152, %s1058, %s1030, 128, 128, 8
        $region52: #{tpu_custom_call.1} parent=43 // pred_fallthru
          _
      $region44: #{tpu_custom_call.1} parent=5 // pred_fallthru
        _
      %p1066 = scmp.le.s32.totalorder 2, %s20
      // Predicated region
      $region53: #{tpu_custom_call.1} parent=5 // pred_check
        %p1067 = pneg %p1066
      $region54: #{tpu_custom_call.1} parent=5 // pred_check_branch
        %1069 = sbr.rel (%p1067) target = $region56
      $region55: #{tpu_custom_call.1} parent=5 // pred_region
        %s1070 = ssub.s32 %s20, 2
        // Predicated region
        $region57: #{tpu_custom_call.1} parent=55 // pred_check
          %p1071 = pneg %p190
        $region58: #{tpu_custom_call.1} parent=55 // pred_check_branch
          %1073 = sbr.rel (%p1071) target = $region60
        $region59: #{tpu_custom_call.1} parent=55 // pred_region
          %s1074 = sand.u32 %s175, 1
          %s1075 = scalar_lea.sflag [#allocation3], %s1074
          %s1076 = sand.u32 %s175, 1
          %s1077 = smul.addr %s1076, 72
          %s1078 = scalar_lea.vmem [#allocation2], %s1077
          %1079 = dma.done %s1075, 1152
        $region60: #{tpu_custom_call.1} parent=55 // pred_fallthru
          _
        // Predicated region
        $region61: #{tpu_custom_call.1} parent=55 // pred_check
          %p1080 = pneg %p216
        $region62: #{tpu_custom_call.1} parent=55 // pred_check_branch
          %1082 = sbr.rel (%p1080) target = $region64
        $region63: #{tpu_custom_call.1} parent=55 // pred_region
          %s1083 = sand.u32 %s201, 1
          %s1084 = scalar_lea.sflag [#allocation5], %s1083
          %s1085 = sand.u32 %s201, 1
          %s1086 = smul.addr %s1085, 72
          %s1087 = scalar_lea.vmem [#allocation4], %s1086
          %1088 = dma.done %s1084, 1152
        $region64: #{tpu_custom_call.1} parent=55 // pred_fallthru
          _
      $region56: #{tpu_custom_call.1} parent=5 // pred_fallthru
        _
    $region6: #{tpu_custom_call.1} parent=1 // loop_footer
      %s24 = sadd.s32 1, %s20
    $region7: #{tpu_custom_call.1} parent=1 // loop_footer_branch
      %19 = sbr.rel target = $region3
    $region8: #{tpu_custom_call.1} parent=1 // loop_exit
      _
    %1089 = vsyncpa [#allocation3], 1
    %s1090 = scalar_lea.sflag [#allocation3], 1
    %1091 = vsyncpa %s1090, 1
    %1092 = vsyncpa [#allocation5], 1
    %s1093 = scalar_lea.sflag [#allocation5], 1
    %1094 = vsyncpa %s1093, 1

</llo_original>
